<compile_context>
chip_gen: v5e
topology: v5e:2x2
jax: 0.10.0
libtpu: 0.0.40
codegen_flags: <defaults>
</compile_context>

<pallas_src>
import functools
import jax
import jax.numpy as jnp
from jax import lax
from jax.experimental import pallas as pl
from jax.experimental.pallas import tpu as pltpu

# Layer sizes of the PyTorch module.
D_IN, D_H, D_OUT = 4, 32, 3


def mlp_kernel(x_ref, w1_ref, b1_ref, w2_ref, b2_ref, w3_ref, b3_ref, o_ref, *, tbc):
    # x_ref: (TB, 4) -- batch on sublanes (native layout, no wrapper transpose).
    # o_ref: (3, TB) -- batch on lanes, lane-dense stores.
    TB = x_ref.shape[0]
    w1 = w1_ref[...]
    b1 = b1_ref[...]
    w2 = w2_ref[...]
    b2 = b2_ref[...]
    w3 = w3_ref[...]
    b3 = b3_ref[...]

    step = min(tbc, TB)  # static chunk size; keeps (32, step) f32 intermediates small
    for start in range(0, TB, step):          # static python loop -> static slices
        size = min(step, TB - start)
        xb = x_ref[pl.ds(start, size), :]                           # (size, 4)
        # Layer 1 as a trans-B matmul: (32,4) . (size,4)^T -> (32, size).
        h1 = lax.dot_general(w1, xb, (((1,), (1,)), ((), ())),
                             preferred_element_type=jnp.float32)
        h1 = jnp.maximum(h1 + b1, 0.0)
        h2 = jnp.dot(w2, h1, preferred_element_type=jnp.float32)    # (32, size)
        h2 = jnp.maximum(h2 + b2, 0.0)
        h3 = jnp.dot(w3, h2, preferred_element_type=jnp.float32) + b3  # (3, size)
        o_ref[:, pl.ds(start, size)] = h3.astype(o_ref.dtype)


def mymodel_forward(x, params, tb_cap=16384, tbc=2048):
    """x: (B, 4) float32. params in PyTorch layout: W (out,in), b (out,1)."""
    w1, b1, w2, b2, w3, b3 = params
    B = x.shape[0]

    # Batch tile selection:
    #  - small B: a single full-array block (always a legal block shape);
    #  - larger B: split into >= 2 grid steps (v7x megacore), tile a multiple
    #    of the inner chunk so every chunk store is 128-lane aligned, capped by
    #    the VMEM budget (the (TB,4) block lane-pads to ~512 B per row).
    if B > 2 * tbc:
        TB = min(tb_cap, pl.cdiv(pl.cdiv(B, 2), tbc) * tbc)
    else:
        TB = B
    grid = (pl.cdiv(B, TB),)   # last block may be partial; Pallas masks the writeback

    flops = 2 * B * (D_IN * D_H + D_H * D_H + D_H * D_OUT)
    param_bytes = 4 * (w1.size + b1.size + w2.size + b2.size + w3.size + b3.size)
    cost = pl.CostEstimate(
        flops=flops,
        transcendentals=0,
        bytes_accessed=4 * B * (D_IN + D_OUT) + param_bytes,
    )

    # Weights/biases: whole-array blocks, constant index_map -> VMEM-resident.
    const = lambda a: pl.BlockSpec(a.shape, lambda i: (0,) * a.ndim)

    out_t = pl.pallas_call(
        functools.partial(mlp_kernel, tbc=tbc),
        out_shape=jax.ShapeDtypeStruct((D_OUT, B), jnp.float32),
        grid=grid,
        in_specs=[
            pl.BlockSpec((TB, D_IN), lambda i: (i, 0)),   # x tiled over batch, native layout
            const(w1), const(b1), const(w2), const(b2), const(w3), const(b3),
        ],
        out_specs=pl.BlockSpec((D_OUT, TB), lambda i: (0, i)),  # lane-dense output
        compiler_params=pltpu.CompilerParams(
            dimension_semantics=("parallel",),
            vmem_limit_bytes=48 * 1024 * 1024,  # > v5e's 16 MiB default, < v7x's 64 MiB physical
        ),
        cost_estimate=cost,
    )(x, w1, b1, w2, b2, w3, b3)

    # Back to (B, 3) row-major for the caller (callers that accept (3, B) can skip this).
    return out_t.T


def init_params(key):
    # PyTorch nn.Linear default init: U(-1/sqrt(fan_in), 1/sqrt(fan_in)),
    # stored in PyTorch (out_features, in_features) layout; bias as (out, 1).
    def linear(key, fan_in, fan_out):
        kw, kb = jax.random.split(key)
        bound = 1.0 / jnp.sqrt(jnp.float32(fan_in))
        w = jax.random.uniform(kw, (fan_out, fan_in), jnp.float32, -bound, bound)
        b = jax.random.uniform(kb, (fan_out, 1), jnp.float32, -bound, bound)
        return w, b

    k1, k2, k3 = jax.random.split(key, 3)
    w1, b1 = linear(k1, D_IN, D_H)
    w2, b2 = linear(k2, D_H, D_H)
    w3, b3 = linear(k3, D_H, D_OUT)
    return (w1, b1, w2, b2, w3, b3)


def reference_forward(x, params):
    w1, b1, w2, b2, w3, b3 = params
    h = jnp.maximum(x @ w1.T + b1[:, 0], 0.0)
    h = jnp.maximum(h @ w2.T + b2[:, 0], 0.0)
    return h @ w3.T + b3[:, 0]


if __name__ == "__main__":
    key = jax.random.PRNGKey(0)
    kp, kx1, kx2, kx3 = jax.random.split(key, 4)
    params = init_params(kp)

    fwd = jax.jit(mymodel_forward, static_argnames=("tb_cap", "tbc"))

    # Tiny batch (the toy regime of the original spec): single block, single chunk.
    x_small = jax.random.normal(kx1, (8, D_IN), jnp.float32)
    out_small = jax.block_until_ready(fwd(x_small, params))
    assert out_small.shape == (8, D_OUT)
    assert jnp.allclose(out_small, reference_forward(x_small, params),
                        atol=1e-5, rtol=1e-5)

    # Non-128-aligned batch, still a single full-array block.
    x_mid = jax.random.normal(kx2, (1000, D_IN), jnp.float32)
    out_mid = jax.block_until_ready(fwd(x_mid, params))
    assert out_mid.shape == (1000, D_OUT)
    assert jnp.allclose(out_mid, reference_forward(x_mid, params),
                        atol=1e-4, rtol=1e-4)

    # Larger batch: multi-step ("parallel") grid, in-kernel chunk loop, and a
    # masked partial last block.
    x_big = jax.random.normal(kx3, (5000, D_IN), jnp.float32)
    out_big = jax.block_until_ready(fwd(x_big, params))
    assert out_big.shape == (5000, D_OUT)
    assert jnp.allclose(out_big, reference_forward(x_big, params),
                        atol=1e-4, rtol=1e-4)

    print("KERNEL_OK")
</pallas_src>

<mosaic_0001>
module attributes {stable_mosaic.version = 11 : i64} {
  func.func @mlp_kernel(%arg0: i32, %arg1: memref<8x4xf32, #tpu.memory_space<vmem>>, %arg2: memref<32x4xf32, #tpu.memory_space<vmem>>, %arg3: memref<32x1xf32, #tpu.memory_space<vmem>>, %arg4: memref<32x32xf32, #tpu.memory_space<vmem>>, %arg5: memref<32x1xf32, #tpu.memory_space<vmem>>, %arg6: memref<3x32xf32, #tpu.memory_space<vmem>>, %arg7: memref<3x1xf32, #tpu.memory_space<vmem>>, %arg8: memref<3x8xf32, #tpu.memory_space<vmem>>) attributes {dimension_semantics = [#tpu.dimension_semantics<parallel>], iteration_bounds = array<i64: 1>, scalar_prefetch = 0 : i64, scratch_operands = 0 : i64, tpu.core_type = #tpu.core_type<tc>, window_params = [{transform_indices = @transform_0, window_bounds = array<i64: 8, 4>}, {pipeline_mode = #tpu.pipeline_mode<synchronous>, transform_indices = @transform_1, window_bounds = array<i64: 32, 4>}, {pipeline_mode = #tpu.pipeline_mode<synchronous>, transform_indices = @transform_2, window_bounds = array<i64: 32, 1>}, {pipeline_mode = #tpu.pipeline_mode<synchronous>, transform_indices = @transform_3, window_bounds = array<i64: 32, 32>}, {pipeline_mode = #tpu.pipeline_mode<synchronous>, transform_indices = @transform_4, window_bounds = array<i64: 32, 1>}, {pipeline_mode = #tpu.pipeline_mode<synchronous>, transform_indices = @transform_5, window_bounds = array<i64: 3, 32>}, {pipeline_mode = #tpu.pipeline_mode<synchronous>, transform_indices = @transform_6, window_bounds = array<i64: 3, 1>}, {transform_indices = @transform_7, window_bounds = array<i64: 3, 8>}]} {
    %c0 = arith.constant 0 : index
    %c0_0 = arith.constant 0 : index
    %0 = vector.load %arg2[%c0, %c0_0] : memref<32x4xf32, #tpu.memory_space<vmem>>, vector<32x4xf32>
    %c0_1 = arith.constant 0 : index
    %c0_2 = arith.constant 0 : index
    %1 = vector.load %arg3[%c0_1, %c0_2] : memref<32x1xf32, #tpu.memory_space<vmem>>, vector<32x1xf32>
    %c0_3 = arith.constant 0 : index
    %c0_4 = arith.constant 0 : index
    %2 = vector.load %arg4[%c0_3, %c0_4] : memref<32x32xf32, #tpu.memory_space<vmem>>, vector<32x32xf32>
    %c0_5 = arith.constant 0 : index
    %c0_6 = arith.constant 0 : index
    %3 = vector.load %arg5[%c0_5, %c0_6] : memref<32x1xf32, #tpu.memory_space<vmem>>, vector<32x1xf32>
    %c0_7 = arith.constant 0 : index
    %c0_8 = arith.constant 0 : index
    %4 = vector.load %arg6[%c0_7, %c0_8] : memref<3x32xf32, #tpu.memory_space<vmem>>, vector<3x32xf32>
    %c0_9 = arith.constant 0 : index
    %c0_10 = arith.constant 0 : index
    %5 = vector.load %arg7[%c0_9, %c0_10] : memref<3x1xf32, #tpu.memory_space<vmem>>, vector<3x1xf32>
    %c0_11 = arith.constant 0 : index
    %c0_12 = arith.constant 0 : index
    %6 = vector.load %arg1[%c0_11, %c0_12] : memref<8x4xf32, #tpu.memory_space<vmem>>, vector<8x4xf32>
    %cst = arith.constant dense<0.000000e+00> : vector<32x8xf32>
    %7 = tpu.matmul %0, %6, %cst {dimension_numbers = #tpu.dot_dimension_numbers<[1], [1], [0], [0], [0, 0, 1, 0], [], []>} : vector<32x4xf32>, vector<8x4xf32>, vector<32x8xf32> -> vector<32x8xf32>
    %8 = vector.broadcast %1 : vector<32x1xf32> to vector<32x8xf32>
    %9 = arith.addf %7, %8 : vector<32x8xf32>
    %cst_13 = arith.constant 0.000000e+00 : f32
    %10 = vector.broadcast %cst_13 : f32 to vector<32x8xf32>
    %11 = arith.maximumf %9, %10 : vector<32x8xf32>
    %cst_14 = arith.constant dense<0.000000e+00> : vector<32x8xf32>
    %12 = tpu.matmul %2, %11, %cst_14 {dimension_numbers = #tpu.dot_dimension_numbers<[1], [0], [0], [1], [0, 0, 1, 1], [], []>} : vector<32x32xf32>, vector<32x8xf32>, vector<32x8xf32> -> vector<32x8xf32>
    %13 = vector.broadcast %3 : vector<32x1xf32> to vector<32x8xf32>
    %14 = arith.addf %12, %13 : vector<32x8xf32>
    %cst_15 = arith.constant 0.000000e+00 : f32
    %15 = vector.broadcast %cst_15 : f32 to vector<32x8xf32>
    %16 = arith.maximumf %14, %15 : vector<32x8xf32>
    %cst_16 = arith.constant dense<0.000000e+00> : vector<3x8xf32>
    %17 = tpu.matmul %4, %16, %cst_16 {dimension_numbers = #tpu.dot_dimension_numbers<[1], [0], [0], [1], [0, 0, 1, 1], [], []>} : vector<3x32xf32>, vector<32x8xf32>, vector<3x8xf32> -> vector<3x8xf32>
    %18 = vector.broadcast %5 : vector<3x1xf32> to vector<3x8xf32>
    %19 = arith.addf %17, %18 : vector<3x8xf32>
    %c0_17 = arith.constant 0 : index
    %c0_18 = arith.constant 0 : index
    %20 = vector.load %arg8[%c0_17, %c0_18] : memref<3x8xf32, #tpu.memory_space<vmem>>, vector<3x8xf32>
    tpu.vector_store %arg8[%c0_17, %c0_18], %19 {strides = array<i32>} : memref<3x8xf32, #tpu.memory_space<vmem>>, vector<3x8xf32>,
    return
  }
  func.func @transform_0(%arg0: i32) -> (i32, i32) {
    %c0_i32 = arith.constant 0 : i32
    %c0_i32_0 = arith.constant 0 : i32
    return %arg0, %c0_i32 : i32, i32
  }
  func.func @transform_1(%arg0: i32) -> (i32, i32) {
    %c0_i32 = arith.constant 0 : i32
    %c0_i32_0 = arith.constant 0 : i32
    %c0_i32_1 = arith.constant 0 : i32
    return %c0_i32, %c0_i32_0 : i32, i32
  }
  func.func @transform_2(%arg0: i32) -> (i32, i32) {
    %c0_i32 = arith.constant 0 : i32
    %c0_i32_0 = arith.constant 0 : i32
    %c0_i32_1 = arith.constant 0 : i32
    return %c0_i32, %c0_i32_0 : i32, i32
  }
  func.func @transform_3(%arg0: i32) -> (i32, i32) {
    %c0_i32 = arith.constant 0 : i32
    %c0_i32_0 = arith.constant 0 : i32
    %c0_i32_1 = arith.constant 0 : i32
    return %c0_i32, %c0_i32_0 : i32, i32
  }
  func.func @transform_4(%arg0: i32) -> (i32, i32) {
    %c0_i32 = arith.constant 0 : i32
    %c0_i32_0 = arith.constant 0 : i32
    %c0_i32_1 = arith.constant 0 : i32
    return %c0_i32, %c0_i32_0 : i32, i32
  }
  func.func @transform_5(%arg0: i32) -> (i32, i32) {
    %c0_i32 = arith.constant 0 : i32
    %c0_i32_0 = arith.constant 0 : i32
    %c0_i32_1 = arith.constant 0 : i32
    return %c0_i32, %c0_i32_0 : i32, i32
  }
  func.func @transform_6(%arg0: i32) -> (i32, i32) {
    %c0_i32 = arith.constant 0 : i32
    %c0_i32_0 = arith.constant 0 : i32
    %c0_i32_1 = arith.constant 0 : i32
    return %c0_i32, %c0_i32_0 : i32, i32
  }
  func.func @transform_7(%arg0: i32) -> (i32, i32) {
    %c0_i32 = arith.constant 0 : i32
    %c0_i32_0 = arith.constant 0 : i32
    return %c0_i32, %arg0 : i32, i32
  }
}

</mosaic_0001>

<llo_original>
// kernel: mymodel_forward.1
$region0: #{mymodel_forward.1}
  #allocation0 [shape = 'u32[]', space=smem, size = 0x4, offset = 0x4, fixed_abs, tag = 'smem constant byte address 0x4 - core index']
  #allocation1 [shape = 'u32[72,128]{1,0:T(1,128)}', space=vmem, size = 0x9000, scoped, tag = 'internal scratch']
  %s0 = inlined_call_operand.vmem [shape: f32[8,4], index: 0, kind: input, shape index: {}]
  %s1 = inlined_call_operand.vmem [shape: f32[32,4], index: 1, kind: input, shape index: {}]
  %s2 = inlined_call_operand.vmem [shape: f32[32,1], index: 2, kind: input, shape index: {}]
  %s3 = inlined_call_operand.vmem [shape: f32[32,32], index: 3, kind: input, shape index: {}]
  %s4 = inlined_call_operand.vmem [shape: f32[32,1], index: 4, kind: input, shape index: {}]
  %s5 = inlined_call_operand.vmem [shape: f32[3,32], index: 5, kind: input, shape index: {}]
  %s6 = inlined_call_operand.vmem [shape: f32[3,1], index: 6, kind: input, shape index: {}]
  %s7 = inlined_call_operand.hbm [shape: f32[3,8], index: 7, kind: output, shape index: {}]
  %s8 = sld [smem:[#allocation0]]
  $region38: #{mymodel_forward.1} parent=0
    _
  %s10 = ssub.s32 1, %s8
  %s11 = scalar_select 0, %s10, %s8
  $region1: #{mymodel_forward.1} parent=0
    #allocation2 [shape = 'u8[2048]{0}', space=vmem, size = 0x800, scoped, tag = 'output window, operand 0, single buffered']
    #allocation3 [shape = 's32[1]{0}', space=sflag, size = 0x4, scoped, tag = 'scoped memory for mymodel_forward.1']
    %12 = vsyncpa [#allocation3], 0
    // Predicated region
    $region2: #{mymodel_forward.1} parent=1 // pred_check
      _
    $region3: #{mymodel_forward.1} parent=1 // pred_check_branch
      %14 = sbr.rel (0) target = $region5
    $region4: #{mymodel_forward.1} parent=1 // pred_region
      _
    $region5: #{mymodel_forward.1} parent=1 // pred_fallthru
      _
    // Predicated region
    $region6: #{mymodel_forward.1} parent=1 // pred_check
      _
    $region7: #{mymodel_forward.1} parent=1 // pred_check_branch
      %16 = sbr.rel (0) target = $region9
    $region8: #{mymodel_forward.1} parent=1 // pred_region
      _
    $region9: #{mymodel_forward.1} parent=1 // pred_fallthru
      _
    // Predicated region
    $region10: #{mymodel_forward.1} parent=1 // pred_check
      _
    $region11: #{mymodel_forward.1} parent=1 // pred_check_branch
      %18 = sbr.rel (0) target = $region13
    $region12: #{mymodel_forward.1} parent=1 // pred_region
      _
    $region13: #{mymodel_forward.1} parent=1 // pred_fallthru
      _
    // Predicated region
    $region14: #{mymodel_forward.1} parent=1 // pred_check
      _
    $region15: #{mymodel_forward.1} parent=1 // pred_check_branch
      %20 = sbr.rel (0) target = $region17
    $region16: #{mymodel_forward.1} parent=1 // pred_region
      _
    $region17: #{mymodel_forward.1} parent=1 // pred_fallthru
      _
    // Predicated region
    $region18: #{mymodel_forward.1} parent=1 // pred_check
      _
    $region19: #{mymodel_forward.1} parent=1 // pred_check_branch
      %22 = sbr.rel (0) target = $region21
    $region20: #{mymodel_forward.1} parent=1 // pred_region
      _
    $region21: #{mymodel_forward.1} parent=1 // pred_fallthru
      _
    // Predicated region
    $region22: #{mymodel_forward.1} parent=1 // pred_check
      _
    $region23: #{mymodel_forward.1} parent=1 // pred_check_branch
      %24 = sbr.rel (0) target = $region25
    $region24: #{mymodel_forward.1} parent=1 // pred_region
      _
    $region25: #{mymodel_forward.1} parent=1 // pred_fallthru
      _
    // Predicated region
    $region26: #{mymodel_forward.1} parent=1 // pred_check
      _
    $region27: #{mymodel_forward.1} parent=1 // pred_check_branch
      %26 = sbr.rel (0) target = $region29
    $region28: #{mymodel_forward.1} parent=1 // pred_region
      _
    $region29: #{mymodel_forward.1} parent=1 // pred_fallthru
      _
    %v27 = vld [vmem:[%s1] sm:$0xff]
    %v28 = vld [vmem:[%s1 + $0x8] sm:$0xff]
    %v29 = vld [vmem:[%s1 + $0x10] sm:$0xff]
    %v30 = vld [vmem:[%s1 + $0x18] sm:$0xff]
    %v31 = vld [vmem:[%s2] sm:$0xff]
    %v32 = vld [vmem:[%s2 + $0x8] sm:$0xff]
    %v33 = vld [vmem:[%s2 + $0x10] sm:$0xff]
    %v34 = vld [vmem:[%s2 + $0x18] sm:$0xff]
    %v35 = vld [vmem:[%s3] sm:$0xff]
    %v36 = vld [vmem:[%s3 + $0x8] sm:$0xff]
    %v37 = vld [vmem:[%s3 + $0x10] sm:$0xff]
    %v38 = vld [vmem:[%s3 + $0x18] sm:$0xff]
    %v39 = vld [vmem:[%s4] sm:$0xff]
    %v40 = vld [vmem:[%s4 + $0x8] sm:$0xff]
    %v41 = vld [vmem:[%s4 + $0x10] sm:$0xff]
    %v42 = vld [vmem:[%s4 + $0x18] sm:$0xff]
    %v43 = vld [vmem:[%s5] sm:$0x7]
    %v44 = vld [vmem:[%s6] sm:$0x7]
    %v45 = vld [vmem:[%s0] sm:$0xff]
    %47 = vset.pattern.permute.xlu0 0
    %48 = vperm.xlu0 %47, %v31
    %v49 = vpop.permute.xlu0 %48
    %52 = vset.pattern.permute.xlu0 0
    %53 = vperm.xlu0 %52, %v32
    %v54 = vpop.permute.xlu0 %53
    %57 = vset.pattern.permute.xlu0 0
    %58 = vperm.xlu0 %57, %v33
    %v59 = vpop.permute.xlu0 %58
    %62 = vset.pattern.permute.xlu0 0
    %63 = vperm.xlu0 %62, %v34
    %v64 = vpop.permute.xlu0 %63
    %vm66 = vcmask 31744
    %v68 = vsel %vm66, %v27, 0
    %v71 = vsel %vm66, %v28, 0
    %v74 = vsel %vm66, %v29, 0
    %v77 = vsel %vm66, %v30, 0
    %v80 = vsel %vm66, %v45, 0
    %82 = vmatpush.xpose.msra.mxu0 0.0
    %83 = vmatpush.xpose.msra.mxu0 0.0
    %84 = vmatpush.xpose.msra.mxu0 0.0
    %85 = vmatpush.xpose.msra.mxu0 0.0
    %86 = vmatpush.xpose.msra.mxu0 0.0
    %87 = vmatpush.xpose.msra.mxu0 0.0
    %88 = vmatpush.xpose.msra.mxu0 0.0
    %89 = vmatpush.xpose.msra.mxu0 0.0
    %90 = vmatpush.xpose.msra.mxu0 0.0
    %91 = vmatpush.xpose.msra.mxu0 0.0
    %92 = vmatpush.xpose.msra.mxu0 0.0
    %93 = vmatpush.xpose.msra.mxu0 0.0
    %94 = vmatpush.xpose.msra.mxu0 0.0
    %95 = vmatpush.xpose.msra.mxu0 0.0
    %96 = vmatpush.xpose.msra.mxu0 0.0
    %97 = vmatpush.xpose.msra.mxu0 %v80
    %98 = vmatmul.f32.gmra.mxu0 %v68
    %v99 = vpop.f32.mrf.mxu0
    %v100 = vadd.f32 %v49, %v99
    %101 = vmatmul.f32.gmra.mxu0 %v71
    %v102 = vpop.f32.mrf.mxu0
    %v103 = vadd.f32 %v54, %v102
    %104 = vmatmul.f32.gmra.mxu0 %v74
    %v105 = vpop.f32.mrf.mxu0
    %v106 = vadd.f32 %v59, %v105
    %107 = vmatmul.f32.gmra.mxu0 %v77
    %v108 = vpop.f32.mrf.mxu0
    %v109 = vadd.f32 %v64, %v108
    %110 = vdwg.mxu0
    %v111 = vmax.f32 %v100, 0.0
    %v112 = vmax.f32 %v103, 0.0
    %v113 = vmax.f32 %v106, 0.0
    %v114 = vmax.f32 %v109, 0.0
    %116 = vset.pattern.permute.xlu0 0
    %117 = vperm.xlu0 %116, %v39
    %v118 = vpop.permute.xlu0 %117
    %121 = vset.pattern.permute.xlu0 0
    %122 = vperm.xlu0 %121, %v40
    %v123 = vpop.permute.xlu0 %122
    %126 = vset.pattern.permute.xlu0 0
    %127 = vperm.xlu0 %126, %v41
    %v128 = vpop.permute.xlu0 %127
    %131 = vset.pattern.permute.xlu0 0
    %132 = vperm.xlu0 %131, %v42
    %v133 = vpop.permute.xlu0 %132
    %vm135 = vcmask 261120
    %v137 = vsel %vm135, %v35, 0
    %v140 = vsel %vm135, %v36, 0
    %v143 = vsel %vm135, %v37, 0
    %v146 = vsel %vm135, %v38, 0
    %148 = vmatpush.msra.mxu0 0.0
    %149 = vmatpush.msra.mxu0 0.0
    %150 = vmatpush.msra.mxu0 0.0
    %151 = vmatpush.msra.mxu0 0.0
    %152 = vmatpush.msra.mxu0 0.0
    %153 = vmatpush.msra.mxu0 0.0
    %154 = vmatpush.msra.mxu0 0.0
    %155 = vmatpush.msra.mxu0 0.0
    %156 = vmatpush.msra.mxu0 0.0
    %157 = vmatpush.msra.mxu0 0.0
    %158 = vmatpush.msra.mxu0 0.0
    %159 = vmatpush.msra.mxu0 0.0
    %160 = vmatpush.msra.mxu0 %v114
    %161 = vmatpush.msra.mxu0 %v113
    %162 = vmatpush.msra.mxu0 %v112
    %163 = vmatpush.msra.mxu0 %v111
    %164 = vmatmul.f32.gmra.mxu0 %v137
    %v165 = vpop.f32.mrf.mxu0
    %v166 = vadd.f32 %v118, %v165
    %167 = vmatmul.f32.gmra.mxu0 %v140
    %v168 = vpop.f32.mrf.mxu0
    %v169 = vadd.f32 %v123, %v168
    %170 = vmatmul.f32.gmra.mxu0 %v143
    %v171 = vpop.f32.mrf.mxu0
    %v172 = vadd.f32 %v128, %v171
    %173 = vmatmul.f32.gmra.mxu0 %v146
    %v174 = vpop.f32.mrf.mxu0
    %v175 = vadd.f32 %v133, %v174
    %176 = vdwg.mxu0
    %v177 = vmax.f32 %v166, 0.0
    %v178 = vmax.f32 %v169, 0.0
    %v179 = vmax.f32 %v172, 0.0
    %v180 = vmax.f32 %v175, 0.0
    %182 = vset.pattern.permute.xlu0 0
    %183 = vperm.xlu0 %182, %v44
    %v184 = vpop.permute.xlu0 %183
    %v187 = vsel %vm135, %v43, 0
    %189 = vmatpush.msra.mxu0 0.0
    %190 = vmatpush.msra.mxu0 0.0
    %191 = vmatpush.msra.mxu0 0.0
    %192 = vmatpush.msra.mxu0 0.0
    %193 = vmatpush.msra.mxu0 0.0
    %194 = vmatpush.msra.mxu0 0.0
    %195 = vmatpush.msra.mxu0 0.0
    %196 = vmatpush.msra.mxu0 0.0
    %197 = vmatpush.msra.mxu0 0.0
    %198 = vmatpush.msra.mxu0 0.0
    %199 = vmatpush.msra.mxu0 0.0
    %200 = vmatpush.msra.mxu0 0.0
    %201 = vmatpush.msra.mxu0 %v180
    %202 = vmatpush.msra.mxu0 %v179
    %203 = vmatpush.msra.mxu0 %v178
    %204 = vmatpush.msra.mxu0 %v177
    %205 = vmatmul.f32.gmra.mxu0 %v187
    %v206 = vpop.f32.mrf.mxu0
    %v207 = vadd.f32 %v184, %v206
    %208 = vdwg.mxu0
    %vm209 = vcmask 59392
    %210 = vst.msk [vmem:[#allocation2] sm:$0x7] %vm209, %v207
    // Predicated region
    $region30: #{mymodel_forward.1} parent=1 // pred_check
      _
    $region31: #{mymodel_forward.1} parent=1 // pred_check_branch
      %212 = sbr.rel (0) target = $region33
    $region32: #{mymodel_forward.1} parent=1 // pred_region
      %214 = vsyncadd [#allocation3], 0
      %s216 = sshll.u32 [#allocation2], 4
      %s217 = int_to_ptr.vmem [resolvable:$true] %s216
      %s218 = sshll.u32 %s7, 4
      %s219 = int_to_ptr.hbm [resolvable:$true] %s218
      %221 = dma.vmem_to_hbm [thread:$0]  %s217, 64, %s219, [#allocation3]
    $region33: #{mymodel_forward.1} parent=1 // pred_fallthru
      _
    // Predicated region
    $region34: #{mymodel_forward.1} parent=1 // pred_check
      _
    $region35: #{mymodel_forward.1} parent=1 // pred_check_branch
      %223 = sbr.rel (0) target = $region37
    $region36: #{mymodel_forward.1} parent=1 // pred_region
      %225 = dma.done [#allocation3], 64
    $region37: #{mymodel_forward.1} parent=1 // pred_fallthru
      _
    %226 = vsyncpa [#allocation3], 1

</llo_original>
